<compile_context>
chip_gen: v5e
topology: v5e:2x2
jax: 0.10.0
libtpu: 0.0.40
codegen_flags: <defaults>
</compile_context>

<pallas_src>
import math

import jax
import jax.numpy as jnp
from jax.experimental import pallas as pl
from jax.experimental.pallas import tpu as pltpu


# ---------------------------------------------------------------------------
# Fused Pallas kernel
# ---------------------------------------------------------------------------
def _channel_att_kernel(w1_ref, s1_ref, b1_ref, w2_ref, b2_ref, im_ref, cv_ref, o_ref):
    """1x1 conv + folded BN + LeakyReLU + 1x1 conv (+bias) + sigmoid + broadcast-gate of cv."""
    x = im_ref[0]                                                        # (Cim, ts)   bf16
    y = jnp.dot(w1_ref[...], x, preferred_element_type=jnp.float32)     # (Cmid, ts)  f32 acc
    y = y * s1_ref[...] + b1_ref[...]                                    # folded BN   (f32)
    y = jnp.where(y >= 0.0, y, 0.01 * y)                                 # LeakyReLU(0.01)
    att = jnp.dot(w2_ref[...], y.astype(jnp.bfloat16),
                  preferred_element_type=jnp.float32) + b2_ref[...]      # (Ccv, ts)   f32
    gate = pl.reciprocal(1.0 + jnp.exp(-att), approx=True)               # sigmoid on EUP
    # gating multiply in f32 (v5e-safe), cast on store to cv's dtype
    o_ref[0] = (gate[:, None, :] * cv_ref[0].astype(jnp.float32)).astype(o_ref.dtype)


# ---------------------------------------------------------------------------
# Wrapper
# ---------------------------------------------------------------------------
def channel_att_forward(params, cv, im):
    """cv: (B, cv_chan, D, H, W), im: (B, im_chan, H, W) -> (B, cv_chan, D, H, W) [cv dtype]."""
    B, Ccv, D, H, W = cv.shape
    Bi, Cim, Hi, Wi = im.shape
    assert (B, H, W) == (Bi, Hi, Wi)
    Cmid = params["w1"].shape[0]

    LANE = 128
    S = H * W
    # im in bf16 (halved DMA; fuses into the producer in a real pipeline). cv keeps its dtype.
    im2 = im.reshape(B, Cim, S).astype(jnp.bfloat16)
    cv2 = cv.reshape(B, Ccv, D, S)

    # --- per-generation VMEM budgeting -------------------------------------------------------
    try:
        vmem_cap = int(pltpu.get_tpu_info().vmem_capacity_bytes)
    except Exception:
        vmem_cap = 64 * 1024 * 1024
    # v5e/v6e (128 MiB) -> 64 MiB limit; v7x (64 MiB) -> 32 MiB limit.
    vmem_limit = min(vmem_cap // 2, 64 * 1024 * 1024)
    # Pallas double-buffers every in/out block -> per-step budget ~ half the limit, minus
    # ~1 MiB headroom for weights / compiler scratch.
    step_budget = max(vmem_limit // 2 - (1 << 20), 1 << 20)

    cv_itemsize = jnp.dtype(cv.dtype).itemsize
    bytes_per_col = 2 * Ccv * D * cv_itemsize + 2 * Cim          # cv in + cv out + bf16 im
    ts = (step_budget // (bytes_per_col * LANE)) * LANE
    ts_cap = max(LANE, (S // LANE) * LANE)                       # never exceed S rounded to lanes
    ts = max(LANE, min(ts, ts_cap))
    n_s = pl.cdiv(S, ts)                                         # partial last tile is masked

    out = pl.pallas_call(
        _channel_att_kernel,
        out_shape=jax.ShapeDtypeStruct((B, Ccv, D, S), cv.dtype),
        grid_spec=pltpu.PrefetchScalarGridSpec(
            num_scalar_prefetch=0,
            grid=(n_s, B),                                            # spatial axis first (v7x 2-TC split)
            in_specs=[
                pl.BlockSpec((Cmid, Cim), lambda s, b: (0, 0)),       # w1 (bf16)
                pl.BlockSpec((Cmid, 1), lambda s, b: (0, 0)),         # folded BN scale
                pl.BlockSpec((Cmid, 1), lambda s, b: (0, 0)),         # folded BN bias
                pl.BlockSpec((Ccv, Cmid), lambda s, b: (0, 0)),       # w2 (bf16)
                pl.BlockSpec((Ccv, 1), lambda s, b: (0, 0)),          # conv2 bias
                pl.BlockSpec((1, Cim, ts), lambda s, b: (b, 0, s)),   # im tile (bf16)
                pl.BlockSpec((1, Ccv, D, ts), lambda s, b: (b, 0, 0, s)),  # cv tile (native dtype)
            ],
            out_specs=pl.BlockSpec((1, Ccv, D, ts), lambda s, b: (b, 0, 0, s)),
        ),
        compiler_params=pltpu.CompilerParams(
            dimension_semantics=("parallel", "parallel"),
            vmem_limit_bytes=vmem_limit,
        ),
        # NOTE: if the caller no longer needs cv, input_output_aliases={6: 0} removes the extra
        # output HBM allocation; left off here to preserve functional semantics.
    )(params["w1"], params["s1"], params["b1"], params["w2"], params["b2"], im2, cv2)

    return out.reshape(B, Ccv, D, H, W)


# ---------------------------------------------------------------------------
# Parameters (deterministic init mirroring SubModule.weight_init)
# ---------------------------------------------------------------------------
def make_channel_att_params(key, cv_chan, im_chan, eps=1e-5):
    cmid = im_chan // 2
    k1, k2, k3, k4, k5 = jax.random.split(key, 5)
    # Conv2d weight ~ N(0, sqrt(2 / (k*k*out_channels)))
    w1 = jax.random.normal(k1, (cmid, im_chan), jnp.float32) * math.sqrt(2.0 / cmid)
    w2 = jax.random.normal(k4, (cv_chan, cmid), jnp.float32) * math.sqrt(2.0 / cv_chan)
    # BatchNorm: gamma=1, beta=0 (weight_init); folded with deterministic running stats.
    mean = jax.random.normal(k2, (cmid,), jnp.float32) * 0.1
    var = jax.random.uniform(k3, (cmid,), jnp.float32, minval=0.5, maxval=1.5)
    scale = 1.0 / jnp.sqrt(var + eps)
    bias = -mean * scale
    # nn.Conv2d default bias init: U(-1/sqrt(fan_in), 1/sqrt(fan_in)), fan_in = cmid.
    bound = 1.0 / math.sqrt(cmid)
    b2 = jax.random.uniform(k5, (cv_chan,), jnp.float32, minval=-bound, maxval=bound)
    return {
        "w1": w1.astype(jnp.bfloat16),
        "s1": scale.reshape(cmid, 1),
        "b1": bias.reshape(cmid, 1),
        "w2": w2.astype(jnp.bfloat16),
        "b2": b2.reshape(cv_chan, 1),
    }


def _ref_forward(params, cv, im):
    """Pure-JAX reference (same bf16 weights / f32 accumulation) for a correctness check."""
    B, Ccv, D, H, W = cv.shape
    Cim = im.shape[1]
    x = im.reshape(B, Cim, H * W).astype(jnp.bfloat16)
    y = jnp.einsum("oc,bcs->bos", params["w1"], x, preferred_element_type=jnp.float32)
    y = y * params["s1"][None] + params["b1"][None]
    y = jnp.where(y >= 0.0, y, 0.01 * y)
    att = jnp.einsum("oc,bcs->bos", params["w2"], y.astype(jnp.bfloat16),
                     preferred_element_type=jnp.float32) + params["b2"][None]
    gate = jax.nn.sigmoid(att)
    out = gate.reshape(B, Ccv, 1, H, W) * cv.astype(jnp.float32)
    return out.astype(cv.dtype)


if __name__ == "__main__":
    key = jax.random.PRNGKey(0)
    k_p, k_cv, k_im = jax.random.split(key, 3)

    # H*W = 320 is NOT a multiple of the 256-lane tile at these shapes -> exercises the
    # masked partial-last-tile path (no padding, no output slicing).
    B, im_chan, cv_chan, D, H, W = 2, 64, 32, 8, 16, 20
    params = make_channel_att_params(k_p, cv_chan, im_chan)
    cv = jax.random.normal(k_cv, (B, cv_chan, D, H, W), jnp.float32)
    im = jax.random.normal(k_im, (B, im_chan, H, W), jnp.float32)

    out = channel_att_forward(params, cv, im)
    out = jax.block_until_ready(out)

    assert out.shape == (B, cv_chan, D, H, W), out.shape
    assert out.dtype == cv.dtype, out.dtype
    assert bool(jnp.isfinite(out).all())

    ref = jax.block_until_ready(_ref_forward(params, cv, im))
    err = float(jnp.max(jnp.abs(out.astype(jnp.float32) - ref.astype(jnp.float32))))
    assert err < 5e-2, f"max abs error vs reference: {err}"

    print("KERNEL_OK")
</pallas_src>

<mosaic_0001>
module attributes {stable_mosaic.version = 11 : i64} {
  func.func @_channel_att_kernel(%arg0: i32, %arg1: i32, %arg2: memref<32x64xbf16, #tpu.memory_space<vmem>>, %arg3: memref<32x1xf32, #tpu.memory_space<vmem>>, %arg4: memref<32x1xf32, #tpu.memory_space<vmem>>, %arg5: memref<32x32xbf16, #tpu.memory_space<vmem>>, %arg6: memref<32x1xf32, #tpu.memory_space<vmem>>, %arg7: memref<1x64x256xbf16, #tpu.memory_space<vmem>>, %arg8: memref<1x32x8x256xf32, #tpu.memory_space<vmem>>, %arg9: memref<1x32x8x256xf32, #tpu.memory_space<vmem>>) attributes {dimension_semantics = [#tpu.dimension_semantics<parallel>, #tpu.dimension_semantics<parallel>], iteration_bounds = array<i64: 2, 2>, scalar_prefetch = 0 : i64, scratch_operands = 0 : i64, tpu.core_type = #tpu.core_type<tc>, window_params = [{pipeline_mode = #tpu.pipeline_mode<synchronous>, transform_indices = @transform_0, window_bounds = array<i64: 32, 64>}, {pipeline_mode = #tpu.pipeline_mode<synchronous>, transform_indices = @transform_1, window_bounds = array<i64: 32, 1>}, {pipeline_mode = #tpu.pipeline_mode<synchronous>, transform_indices = @transform_2, window_bounds = array<i64: 32, 1>}, {pipeline_mode = #tpu.pipeline_mode<synchronous>, transform_indices = @transform_3, window_bounds = array<i64: 32, 32>}, {pipeline_mode = #tpu.pipeline_mode<synchronous>, transform_indices = @transform_4, window_bounds = array<i64: 32, 1>}, {transform_indices = @transform_5, window_bounds = array<i64: 1, 64, 256>}, {transform_indices = @transform_6, window_bounds = array<i64: 1, 32, 8, 256>}, {transform_indices = @transform_7, window_bounds = array<i64: 1, 32, 8, 256>}]} {
    %c0 = arith.constant 0 : index
    %c0_0 = arith.constant 0 : index
    %c0_1 = arith.constant 0 : index
    %0 = vector.load %arg7[%c0, %c0_0, %c0_1] : memref<1x64x256xbf16, #tpu.memory_space<vmem>>, vector<1x64x256xbf16>
    %1 = vector.shape_cast %0 : vector<1x64x256xbf16> to vector<64x256xbf16>
    %c0_2 = arith.constant 0 : index
    %c0_3 = arith.constant 0 : index
    %2 = vector.load %arg2[%c0_2, %c0_3] : memref<32x64xbf16, #tpu.memory_space<vmem>>, vector<32x64xbf16>
    %cst = arith.constant dense<0.000000e+00> : vector<32x256xf32>
    %3 = tpu.matmul %2, %1, %cst {dimension_numbers = #tpu.dot_dimension_numbers<[1], [0], [0], [1], [0, 0, 1, 1], [], []>} : vector<32x64xbf16>, vector<64x256xbf16>, vector<32x256xf32> -> vector<32x256xf32>
    %c0_4 = arith.constant 0 : index
    %c0_5 = arith.constant 0 : index
    %4 = vector.load %arg3[%c0_4, %c0_5] : memref<32x1xf32, #tpu.memory_space<vmem>>, vector<32x1xf32>
    %5 = vector.broadcast %4 : vector<32x1xf32> to vector<32x256xf32>
    %6 = arith.mulf %3, %5 : vector<32x256xf32>
    %c0_6 = arith.constant 0 : index
    %c0_7 = arith.constant 0 : index
    %7 = vector.load %arg4[%c0_6, %c0_7] : memref<32x1xf32, #tpu.memory_space<vmem>>, vector<32x1xf32>
    %8 = vector.broadcast %7 : vector<32x1xf32> to vector<32x256xf32>
    %9 = arith.addf %6, %8 : vector<32x256xf32>
    %cst_8 = arith.constant 0.000000e+00 : f32
    %10 = vector.broadcast %cst_8 : f32 to vector<32x256xf32>
    %11 = arith.cmpf oge, %9, %10 : vector<32x256xf32>
    %cst_9 = arith.constant 0.00999999977 : f32
    %12 = vector.broadcast %cst_9 : f32 to vector<32x256xf32>
    %13 = arith.mulf %12, %9 : vector<32x256xf32>
    %14 = arith.select %11, %9, %13 : vector<32x256xi1>, vector<32x256xf32>
    %c0_10 = arith.constant 0 : index
    %c0_11 = arith.constant 0 : index
    %15 = vector.load %arg5[%c0_10, %c0_11] : memref<32x32xbf16, #tpu.memory_space<vmem>>, vector<32x32xbf16>
    %16 = arith.truncf %14 : vector<32x256xf32> to vector<32x256xbf16>
    %cst_12 = arith.constant dense<0.000000e+00> : vector<32x256xf32>
    %17 = tpu.matmul %15, %16, %cst_12 {dimension_numbers = #tpu.dot_dimension_numbers<[1], [0], [0], [1], [0, 0, 1, 1], [], []>} : vector<32x32xbf16>, vector<32x256xbf16>, vector<32x256xf32> -> vector<32x256xf32>
    %c0_13 = arith.constant 0 : index
    %c0_14 = arith.constant 0 : index
    %18 = vector.load %arg6[%c0_13, %c0_14] : memref<32x1xf32, #tpu.memory_space<vmem>>, vector<32x1xf32>
    %19 = vector.broadcast %18 : vector<32x1xf32> to vector<32x256xf32>
    %20 = arith.addf %17, %19 : vector<32x256xf32>
    %cst_15 = arith.constant 0.000000e+00 : f32
    %21 = vector.broadcast %cst_15 : f32 to vector<32x256xf32>
    %22 = arith.subf %21, %20 : vector<32x256xf32>
    %23 = math.exp %22 : vector<32x256xf32>
    %cst_16 = arith.constant 1.000000e+00 : f32
    %24 = vector.broadcast %cst_16 : f32 to vector<32x256xf32>
    %25 = arith.addf %24, %23 : vector<32x256xf32>
    %26 = tpu.reciprocal %25 {approx = true} : vector<32x256xf32> -> vector<32x256xf32>
    %27 = vector.shape_cast %26 : vector<32x256xf32> to vector<32x1x256xf32>
    %c0_17 = arith.constant 0 : index
    %c0_18 = arith.constant 0 : index
    %c0_19 = arith.constant 0 : index
    %c0_20 = arith.constant 0 : index
    %28 = vector.load %arg8[%c0_17, %c0_18, %c0_19, %c0_20] : memref<1x32x8x256xf32, #tpu.memory_space<vmem>>, vector<1x32x8x256xf32>
    %29 = vector.shape_cast %28 : vector<1x32x8x256xf32> to vector<32x8x256xf32>
    %30 = vector.broadcast %27 : vector<32x1x256xf32> to vector<32x8x256xf32>
    %31 = arith.mulf %30, %29 : vector<32x8x256xf32>
    %c0_21 = arith.constant 0 : index
    %c0_22 = arith.constant 0 : index
    %c0_23 = arith.constant 0 : index
    %c0_24 = arith.constant 0 : index
    %32 = vector.load %arg9[%c0_21, %c0_22, %c0_23, %c0_24] : memref<1x32x8x256xf32, #tpu.memory_space<vmem>>, vector<1x32x8x256xf32>
    %33 = vector.shape_cast %32 : vector<1x32x8x256xf32> to vector<32x8x256xf32>
    %34 = vector.shape_cast %31 : vector<32x8x256xf32> to vector<1x32x8x256xf32>
    tpu.vector_store %arg9[%c0_21, %c0_22, %c0_23, %c0_24], %34 {strides = array<i32>} : memref<1x32x8x256xf32, #tpu.memory_space<vmem>>, vector<1x32x8x256xf32>,
    return
  }
  func.func @transform_0(%arg0: i32, %arg1: i32) -> (i32, i32) {
    %c0_i32 = arith.constant 0 : i32
    %c0_i32_0 = arith.constant 0 : i32
    %c0_i32_1 = arith.constant 0 : i32
    return %c0_i32, %c0_i32_0 : i32, i32
  }
  func.func @transform_1(%arg0: i32, %arg1: i32) -> (i32, i32) {
    %c0_i32 = arith.constant 0 : i32
    %c0_i32_0 = arith.constant 0 : i32
    %c0_i32_1 = arith.constant 0 : i32
    return %c0_i32, %c0_i32_0 : i32, i32
  }
  func.func @transform_2(%arg0: i32, %arg1: i32) -> (i32, i32) {
    %c0_i32 = arith.constant 0 : i32
    %c0_i32_0 = arith.constant 0 : i32
    %c0_i32_1 = arith.constant 0 : i32
    return %c0_i32, %c0_i32_0 : i32, i32
  }
  func.func @transform_3(%arg0: i32, %arg1: i32) -> (i32, i32) {
    %c0_i32 = arith.constant 0 : i32
    %c0_i32_0 = arith.constant 0 : i32
    %c0_i32_1 = arith.constant 0 : i32
    return %c0_i32, %c0_i32_0 : i32, i32
  }
  func.func @transform_4(%arg0: i32, %arg1: i32) -> (i32, i32) {
    %c0_i32 = arith.constant 0 : i32
    %c0_i32_0 = arith.constant 0 : i32
    %c0_i32_1 = arith.constant 0 : i32
    return %c0_i32, %c0_i32_0 : i32, i32
  }
  func.func @transform_5(%arg0: i32, %arg1: i32) -> (i32, i32, i32) {
    %c0_i32 = arith.constant 0 : i32
    %c0_i32_0 = arith.constant 0 : i32
    return %arg1, %c0_i32, %arg0 : i32, i32, i32
  }
  func.func @transform_6(%arg0: i32, %arg1: i32) -> (i32, i32, i32, i32) {
    %c0_i32 = arith.constant 0 : i32
    %c0_i32_0 = arith.constant 0 : i32
    %c0_i32_1 = arith.constant 0 : i32
    return %arg1, %c0_i32, %c0_i32_0, %arg0 : i32, i32, i32, i32
  }
  func.func @transform_7(%arg0: i32, %arg1: i32) -> (i32, i32, i32, i32) {
    %c0_i32 = arith.constant 0 : i32
    %c0_i32_0 = arith.constant 0 : i32
    %c0_i32_1 = arith.constant 0 : i32
    return %arg1, %c0_i32, %c0_i32_0, %arg0 : i32, i32, i32, i32
  }
}

</mosaic_0001>

<llo_original>
// kernel: tpu_custom_call.1
$region0: #{tpu_custom_call.1}
  #allocation0 [shape = 'u32[]', space=smem, size = 0x4, offset = 0x4, fixed_abs, tag = 'smem constant byte address 0x4 - core index']
  #allocation1 [shape = 'u32[72,128]{1,0:T(1,128)}', space=vmem, size = 0x9000, scoped, tag = 'internal scratch']
  %s0 = inlined_call_operand.vmem [shape: bf16[32,64], index: 0, kind: input, shape index: {}]
  %s1 = inlined_call_operand.vmem [shape: f32[32,1], index: 1, kind: input, shape index: {}]
  %s2 = inlined_call_operand.vmem [shape: f32[32,1], index: 2, kind: input, shape index: {}]
  %s3 = inlined_call_operand.vmem [shape: bf16[32,32], index: 3, kind: input, shape index: {}]
  %s4 = inlined_call_operand.vmem [shape: f32[32,1], index: 4, kind: input, shape index: {}]
  %s5 = inlined_call_operand.hbm [shape: bf16[2,64,320], index: 5, kind: input, shape index: {}]
  %s6 = inlined_call_operand.hbm [shape: f32[2,32,8,320], index: 6, kind: input, shape index: {}]
  %s7 = inlined_call_operand.hbm [shape: f32[2,32,8,320], index: 7, kind: output, shape index: {}]
  %s8 = sld [smem:[#allocation0]]
  $region69: #{tpu_custom_call.1} parent=0
    _
  %s10 = ssub.s32 1, %s8
  %s11 = scalar_select 0, %s10, %s8
  $region1: #{tpu_custom_call.1} parent=0
    #allocation2 [shape = 'u8[65536]{0}', space=vmem, size = 0x10000, scoped, tag = 'input window, operand 5']
    #allocation3 [shape = 's32[2]{0}', space=sflag, size = 0x8, scoped, tag = 'scoped memory for tpu_custom_call.1']
    #allocation4 [shape = 's32[2]{0}', space=sflag, size = 0x8, scoped, tag = 'scoped memory for tpu_custom_call.1']
    #allocation5 [shape = 'u8[524288]{0}', space=vmem, size = 0x80000, scoped, tag = 'input window, operand 6']
    #allocation6 [shape = 's32[2]{0}', space=sflag, size = 0x8, scoped, tag = 'scoped memory for tpu_custom_call.1']
    #allocation7 [shape = 'u8[524288]{0}', space=vmem, size = 0x80000, scoped, tag = 'output window, operand 0']
    %12 = vsyncpa [#allocation3], 0
    %s13 = scalar_lea.sflag [#allocation3], 1
    %14 = vsyncpa %s13, 0
    %15 = vsyncpa [#allocation6], 0
    %s16 = scalar_lea.sflag [#allocation6], 1
    %17 = vsyncpa %s16, 0
    %18 = vsyncpa [#allocation4], 0
    %s19 = scalar_lea.sflag [#allocation4], 1
    %20 = vsyncpa %s19, 0
    loop: start=0, step=1, limit=6
    $region2: #{tpu_custom_call.1} parent=1 // loop_pre_header
      _
    $region3: #{tpu_custom_call.1} parent=1 // loop_header
      %s22 = sphi 0, %s26
      %p23 = scmp.ge.s32.totalorder %s22, 6
      %s29 = sphi 0, %s41
      %s30 = sphi 0, %s37
      %s31 = sphi 0, %s29
      %s32 = sphi 0, %s30
      %s33 = sphi 0, %s31
      %s34 = sphi 0, %s32
      %s42 = sphi 0, %s42
      %s44 = sphi 0, %s42
      %s45 = sphi 0, %s44
      %s59 = sphi 0, %s45
      %s63 = sphi 0, %s63
      %s65 = sphi 0, %s63
      %s66 = sphi 0, %s65
      %s80 = sphi 0, %s66
      %s84 = sphi 0, %s84
      %s86 = sphi 0, %s84
      %s87 = sphi 0, %s86
      %s101 = sphi 0, %s87
      %s105 = sphi 0, %s105
      %s107 = sphi 0, %s105
      %s108 = sphi 0, %s107
      %s122 = sphi 0, %s108
      %s126 = sphi 0, %s126
      %s128 = sphi 0, %s126
      %s129 = sphi 0, %s128
      %s143 = sphi 0, %s129
      %s151 = sphi 0, %s153
      %s154 = sphi 0, %s151
      %s155 = sphi 0, %s154
      %s171 = sphi 0, %s155
      %s179 = sphi 0, %s181
      %s182 = sphi 0, %s179
      %s183 = sphi 0, %s182
      %s199 = sphi 0, %s183
      %s207 = sphi 0, %s209
      %s210 = sphi 0, %s207
      %s211 = sphi 0, %s210
      %s227 = sphi 0, %s211
    $region4: #{tpu_custom_call.1} parent=1 // loop_header_branch
      %25 = sbr.rel (%p23) target = $region8
    $region5: #{tpu_custom_call.1} parent=1 // loop_body
      %s27 = ssub.s32 %s22, 1
      %s28 = ssub.s32 %s22, 2
      %s35 = sadd.s32 1, %s30
      %p36 = scmp.ge.s32.totalorder %s35, 2
      %s37 = scalar_select %p36, 0, %s35
      %s38 = sadd.s32 1, %s29
      %s39 = scalar_select %p36, %s38, %s29
      %p40 = scmp.ge.s32.totalorder %s39, 2
      %s41 = scalar_select %p40, 0, %s39
      %s43 = sadd.s32 %s42, 1
      %p46 = scmp.eq.s32.totalorder %s22, 3
      %p47 = scmp.ne.s32.totalorder %s42, %s44
      %p48 = scmp.eq.s32.totalorder %s22, 0
      %p49 = por %p47, %p48
      %p50 = scmp.ne.s32.totalorder %s42, %s44
      %p51 = scmp.eq.s32.totalorder %s27, 3
      %p52 = por %p50, %p51
      %p53 = scmp.ne.s32.totalorder %s44, %s45
      %p54 = scmp.eq.s32.totalorder %s27, 0
      %p55 = por %p53, %p54
      %p56 = scmp.ne.s32.totalorder %s44, %s45
      %p57 = scmp.eq.s32.totalorder %s28, 3
      %p58 = por %p56, %p57
      %p60 = scmp.ne.s32.totalorder %s45, %s59
      %p61 = scmp.eq.s32.totalorder %s28, 0
      %p62 = por %p60, %p61
      %s64 = sadd.s32 %s63, 1
      %p67 = scmp.eq.s32.totalorder %s22, 3
      %p68 = scmp.ne.s32.totalorder %s63, %s65
      %p69 = scmp.eq.s32.totalorder %s22, 0
      %p70 = por %p68, %p69
      %p71 = scmp.ne.s32.totalorder %s63, %s65
      %p72 = scmp.eq.s32.totalorder %s27, 3
      %p73 = por %p71, %p72
      %p74 = scmp.ne.s32.totalorder %s65, %s66
      %p75 = scmp.eq.s32.totalorder %s27, 0
      %p76 = por %p74, %p75
      %p77 = scmp.ne.s32.totalorder %s65, %s66
      %p78 = scmp.eq.s32.totalorder %s28, 3
      %p79 = por %p77, %p78
      %p81 = scmp.ne.s32.totalorder %s66, %s80
      %p82 = scmp.eq.s32.totalorder %s28, 0
      %p83 = por %p81, %p82
      %s85 = sadd.s32 %s84, 1
      %p88 = scmp.eq.s32.totalorder %s22, 3
      %p89 = scmp.ne.s32.totalorder %s84, %s86
      %p90 = scmp.eq.s32.totalorder %s22, 0
      %p91 = por %p89, %p90
      %p92 = scmp.ne.s32.totalorder %s84, %s86
      %p93 = scmp.eq.s32.totalorder %s27, 3
      %p94 = por %p92, %p93
      %p95 = scmp.ne.s32.totalorder %s86, %s87
      %p96 = scmp.eq.s32.totalorder %s27, 0
      %p97 = por %p95, %p96
      %p98 = scmp.ne.s32.totalorder %s86, %s87
      %p99 = scmp.eq.s32.totalorder %s28, 3
      %p100 = por %p98, %p99
      %p102 = scmp.ne.s32.totalorder %s87, %s101
      %p103 = scmp.eq.s32.totalorder %s28, 0
      %p104 = por %p102, %p103
      %s106 = sadd.s32 %s105, 1
      %p109 = scmp.eq.s32.totalorder %s22, 3
      %p110 = scmp.ne.s32.totalorder %s105, %s107
      %p111 = scmp.eq.s32.totalorder %s22, 0
      %p112 = por %p110, %p111
      %p113 = scmp.ne.s32.totalorder %s105, %s107
      %p114 = scmp.eq.s32.totalorder %s27, 3
      %p115 = por %p113, %p114
      %p116 = scmp.ne.s32.totalorder %s107, %s108
      %p117 = scmp.eq.s32.totalorder %s27, 0
      %p118 = por %p116, %p117
      %p119 = scmp.ne.s32.totalorder %s107, %s108
      %p120 = scmp.eq.s32.totalorder %s28, 3
      %p121 = por %p119, %p120
      %p123 = scmp.ne.s32.totalorder %s108, %s122
      %p124 = scmp.eq.s32.totalorder %s28, 0
      %p125 = por %p123, %p124
      %s127 = sadd.s32 %s126, 1
      %p130 = scmp.eq.s32.totalorder %s22, 3
      %p131 = scmp.ne.s32.totalorder %s126, %s128
      %p132 = scmp.eq.s32.totalorder %s22, 0
      %p133 = por %p131, %p132
      %p134 = scmp.ne.s32.totalorder %s126, %s128
      %p135 = scmp.eq.s32.totalorder %s27, 3
      %p136 = por %p134, %p135
      %p137 = scmp.ne.s32.totalorder %s128, %s129
      %p138 = scmp.eq.s32.totalorder %s27, 0
      %p139 = por %p137, %p138
      %p140 = scmp.ne.s32.totalorder %s128, %s129
      %p141 = scmp.eq.s32.totalorder %s28, 3
      %p142 = por %p140, %p141
      %p144 = scmp.ne.s32.totalorder %s129, %s143
      %p145 = scmp.eq.s32.totalorder %s28, 0
      %p146 = por %p144, %p145
      %s147 = ssub.s32 %s30, %s37
      %s148 = ssub.s32 %s29, %s41
      %s149 = sor.u32 %s147, %s148
      %p150 = scmp.eq.s32.totalorder %s149, 0
      %s152 = sadd.s32 %s151, 1
      %s153 = scalar_select %p150, %s151, %s152
      %p156 = pneg %p150
      %p157 = scmp.eq.s32.totalorder %s22, 3
      %p158 = por %p156, %p157
      %p159 = scmp.ne.s32.totalorder %s151, %s154
      %p160 = scmp.eq.s32.totalorder %s22, 0
      %p161 = por %p159, %p160
      %p162 = scmp.ne.s32.totalorder %s151, %s154
      %p163 = scmp.eq.s32.totalorder %s27, 3
      %p164 = por %p162, %p163
      %p165 = scmp.ne.s32.totalorder %s154, %s155
      %p166 = scmp.eq.s32.totalorder %s27, 0
      %p167 = por %p165, %p166
      %p168 = scmp.ne.s32.totalorder %s154, %s155
      %p169 = scmp.eq.s32.totalorder %s28, 3
      %p170 = por %p168, %p169
      %p172 = scmp.ne.s32.totalorder %s155, %s171
      %p173 = scmp.eq.s32.totalorder %s28, 0
      %p174 = por %p172, %p173
      %s175 = ssub.s32 %s30, %s37
      %s176 = ssub.s32 %s29, %s41
      %s177 = sor.u32 %s175, %s176
      %p178 = scmp.eq.s32.totalorder %s177, 0
      %s180 = sadd.s32 %s179, 1
      %s181 = scalar_select %p178, %s179, %s180
      %p184 = pneg %p178
      %p185 = scmp.eq.s32.totalorder %s22, 3
      %p186 = por %p184, %p185
      %p187 = scmp.ne.s32.totalorder %s179, %s182
      %p188 = scmp.eq.s32.totalorder %s22, 0
      %p189 = por %p187, %p188
      %p190 = scmp.ne.s32.totalorder %s179, %s182
      %p191 = scmp.eq.s32.totalorder %s27, 3
      %p192 = por %p190, %p191
      %p193 = scmp.ne.s32.totalorder %s182, %s183
      %p194 = scmp.eq.s32.totalorder %s27, 0
      %p195 = por %p193, %p194
      %p196 = scmp.ne.s32.totalorder %s182, %s183
      %p197 = scmp.eq.s32.totalorder %s28, 3
      %p198 = por %p196, %p197
      %p200 = scmp.ne.s32.totalorder %s183, %s199
      %p201 = scmp.eq.s32.totalorder %s28, 0
      %p202 = por %p200, %p201
      %s203 = ssub.s32 %s30, %s37
      %s204 = ssub.s32 %s29, %s41
      %s205 = sor.u32 %s203, %s204
      %p206 = scmp.eq.s32.totalorder %s205, 0
      %s208 = sadd.s32 %s207, 1
      %s209 = scalar_select %p206, %s207, %s208
      %p212 = pneg %p206
      %p213 = scmp.eq.s32.totalorder %s22, 3
      %p214 = por %p212, %p213
      %p215 = scmp.ne.s32.totalorder %s207, %s210
      %p216 = scmp.eq.s32.totalorder %s22, 0
      %p217 = por %p215, %p216
      %p218 = scmp.ne.s32.totalorder %s207, %s210
      %p219 = scmp.eq.s32.totalorder %s27, 3
      %p220 = por %p218, %p219
      %p221 = scmp.ne.s32.totalorder %s210, %s211
      %p222 = scmp.eq.s32.totalorder %s27, 0
      %p223 = por %p221, %p222
      %p224 = scmp.ne.s32.totalorder %s210, %s211
      %p225 = scmp.eq.s32.totalorder %s28, 3
      %p226 = por %p224, %p225
      %p228 = scmp.ne.s32.totalorder %s211, %s227
      %p229 = scmp.eq.s32.totalorder %s28, 0
      %p230 = por %p228, %p229
      %p231 = scmp.le.s32.totalorder 1, %s22
      %p232 = scmp.lt.s32.totalorder %s22, 5
      %p233 = pnand %p231, %p232
      %p234 = pneg %p233
      // Predicated region
      $region9: #{tpu_custom_call.1} parent=5 // pred_check
        _
      $region10: #{tpu_custom_call.1} parent=5 // pred_check_branch
        %236 = sbr.rel (%p233) target = $region12
      $region11: #{tpu_custom_call.1} parent=5 // pred_region
        %s237 = ssub.s32 %s22, 1
        // Predicated region
        $region13: #{tpu_custom_call.1} parent=11 // pred_check
          %p238 = pneg %p55
        $region14: #{tpu_custom_call.1} parent=11 // pred_check_branch
          %240 = sbr.rel (%p238) target = $region16
        $region15: #{tpu_custom_call.1} parent=11 // pred_region
          _
        $region16: #{tpu_custom_call.1} parent=11 // pred_fallthru
          _
        // Predicated region
        $region17: #{tpu_custom_call.1} parent=11 // pred_check
          %p241 = pneg %p76
        $region18: #{tpu_custom_call.1} parent=11 // pred_check_branch
          %243 = sbr.rel (%p241) target = $region20
        $region19: #{tpu_custom_call.1} parent=11 // pred_region
          _
        $region20: #{tpu_custom_call.1} parent=11 // pred_fallthru
          _
        // Predicated region
        $region21: #{tpu_custom_call.1} parent=11 // pred_check
          %p244 = pneg %p97
        $region22: #{tpu_custom_call.1} parent=11 // pred_check_branch
          %246 = sbr.rel (%p244) target = $region24
        $region23: #{tpu_custom_call.1} parent=11 // pred_region
          _
        $region24: #{tpu_custom_call.1} parent=11 // pred_fallthru
          _
        // Predicated region
        $region25: #{tpu_custom_call.1} parent=11 // pred_check
          %p247 = pneg %p118
        $region26: #{tpu_custom_call.1} parent=11 // pred_check_branch
          %249 = sbr.rel (%p247) target = $region28
        $region27: #{tpu_custom_call.1} parent=11 // pred_region
          _
        $region28: #{tpu_custom_call.1} parent=11 // pred_fallthru
          _
        // Predicated region
        $region29: #{tpu_custom_call.1} parent=11 // pred_check
          %p250 = pneg %p139
        $region30: #{tpu_custom_call.1} parent=11 // pred_check_branch
          %252 = sbr.rel (%p250) target = $region32
        $region31: #{tpu_custom_call.1} parent=11 // pred_region
          _
        $region32: #{tpu_custom_call.1} parent=11 // pred_fallthru
          _
      $region12: #{tpu_custom_call.1} parent=5 // pred_fallthru
        _
      %p253 = scmp.lt.s32.totalorder %s22, 4
      // Predicated region
      $region33: #{tpu_custom_call.1} parent=5 // pred_check
        %p254 = pneg %p253
      $region34: #{tpu_custom_call.1} parent=5 // pred_check_branch
        %256 = sbr.rel (%p254) target = $region36
      $region35: #{tpu_custom_call.1} parent=5 // pred_region
        // Predicated region
        $region37: #{tpu_custom_call.1} parent=35 // pred_check
          %p257 = pneg %p161
        $region38: #{tpu_custom_call.1} parent=35 // pred_check_branch
          %259 = sbr.rel (%p257) target = $region40
        $region39: #{tpu_custom_call.1} parent=35 // pred_region
          %s260 = sand.u32 %s151, 1
          %s261 = scalar_lea.sflag [#allocation3], %s260
          %s262 = sand.u32 %s151, 1
          %s263 = smul.addr %s262, 64
          %s264 = scalar_lea.vmem [#allocation2], %s263
          %s265 = smul.u32 2, %s29
          %s266 = ssub.s32 3, %s265
          %p267 = scmp.lt.s32.totalorder %s266, 2
          %s268 = scalar_select %p267, %s266, 2
          %s269 = smul.u32 32, %s268
          %s270 = ssub.s32 64, %s269
          %s271 = sshll.u32 %s270, 4
          %272 = vsyncadd %s261, %s271
          %p273 = scmp.ne.s32.totalorder 0, %s269
          %s274 = smul.addr %s30, 24
          %s275 = sadd.s32 %s265, %s274
          %s276 = smul.addr %s275, 4
          %s277 = scalar_lea.hbm %s5, %s276
          %s278 = smul.u32 %s268, 4
          %s279 = smul.u32 %s278, 8
          %s280 = sshll.u32 %s277, 4
          %s281 = int_to_ptr.hbm [resolvable:$true] %s280
          %s282 = sshll.u32 %s264, 4
          %s283 = int_to_ptr.vmem [resolvable:$true] %s282
          %s284 = sshll.u32 %s279, 4
          %288 = dma.hbm_to_vmem [thread:$0]  (%p273), %s281, %s284, %s283, %s261, 192, 128, %s278
        $region40: #{tpu_custom_call.1} parent=35 // pred_fallthru
          _
        // Predicated region
        $region41: #{tpu_custom_call.1} parent=35 // pred_check
          %p289 = pneg %p189
        $region42: #{tpu_custom_call.1} parent=35 // pred_check_branch
          %291 = sbr.rel (%p289) target = $region44
        $region43: #{tpu_custom_call.1} parent=35 // pred_region
          %s292 = sand.u32 %s179, 1
          %s293 = scalar_lea.sflag [#allocation6], %s292
          %s294 = sand.u32 %s179, 1
          %s295 = smul.addr %s294, 512
          %s296 = scalar_lea.vmem [#allocation5], %s295
          %s297 = smul.u32 2, %s29
          %s298 = ssub.s32 3, %s297
          %p299 = scmp.lt.s32.totalorder %s298, 2
          %s300 = scalar_select %p299, %s298, 2
          %s301 = smul.u32 256, %s300
          %s302 = ssub.s32 512, %s301
          %s303 = sshll.u32 %s302, 4
          %304 = vsyncadd %s293, %s303
          %p305 = scmp.ne.s32.totalorder 0, %s301
          %s306 = smul.addr %s30, 96
          %s307 = sadd.s32 %s297, %s306
          %s308 = smul.addr %s307, 8
          %s309 = scalar_lea.hbm %s6, %s308
          %s310 = smul.u32 %s300, 8
          %s311 = smul.u32 %s310, 32
          %s312 = sshll.u32 %s309, 4
          %s313 = int_to_ptr.hbm [resolvable:$true] %s312
          %s314 = sshll.u32 %s296, 4
          %s315 = int_to_ptr.vmem [resolvable:$true] %s314
          %s316 = sshll.u32 %s311, 4
          %320 = dma.hbm_to_vmem [thread:$0]  (%p305), %s313, %s316, %s315, %s293, 384, 256, %s310
        $region44: #{tpu_custom_call.1} parent=35 // pred_fallthru
          _
      $region36: #{tpu_custom_call.1} parent=5 // pred_fallthru
        _
      %p321 = scmp.le.s32.totalorder 1, %s22
      %p322 = scmp.lt.s32.totalorder %s22, 5
      %p323 = pnand %p321, %p322
      %p324 = pneg %p323
      // Predicated region
      $region45: #{tpu_custom_call.1} parent=5 // pred_check
        _
      $region46: #{tpu_custom_call.1} parent=5 // pred_check_branch
        %326 = sbr.rel (%p323) target = $region48
      $region47: #{tpu_custom_call.1} parent=5 // pred_region
        %s327 = ssub.s32 %s22, 1
        %s328 = sand.u32 %s154, 1
        %s329 = scalar_lea.sflag [#allocation3], %s328
        %s330 = sand.u32 %s154, 1
        %s331 = smul.addr %s330, 64
        %s332 = scalar_lea.vmem [#allocation2], %s331
        // Predicated region
        $region49: #{tpu_custom_call.1} parent=47 // pred_check
          %p333 = pneg %p167
        $region50: #{tpu_custom_call.1} parent=47 // pred_check_branch
          %335 = sbr.rel (%p333) target = $region52
        $region51: #{tpu_custom_call.1} parent=47 // pred_region
          %337 = dma.done %s329, 1024
        $region52: #{tpu_custom_call.1} parent=47 // pred_fallthru
          _
        %s338 = sand.u32 %s182, 1
        %s339 = scalar_lea.sflag [#allocation6], %s338
        %s340 = sand.u32 %s182, 1
        %s341 = smul.addr %s340, 512
        %s342 = scalar_lea.vmem [#allocation5], %s341
        // Predicated region
        $region53: #{tpu_custom_call.1} parent=47 // pred_check
          %p343 = pneg %p195
        $region54: #{tpu_custom_call.1} parent=47 // pred_check_branch
          %345 = sbr.rel (%p343) target = $region56
        $region55: #{tpu_custom_call.1} parent=47 // pred_region
          %347 = dma.done %s339, 8192
        $region56: #{tpu_custom_call.1} parent=47 // pred_fallthru
          _
        %p348 = pneg %p55
        %p349 = pneg %p52
        %p350 = pneg %p76
        %p351 = pneg %p73
        %p352 = pneg %p97
        %p353 = pneg %p94
        %p354 = pneg %p118
        %p355 = pneg %p115
        %p356 = pneg %p139
        %p357 = pneg %p136
        %s358 = sand.u32 %s154, 1
        %s359 = scalar_lea.sflag [#allocation3], %s358
        %s360 = sand.u32 %s154, 1
        %s361 = smul.addr %s360, 64
        %s362 = scalar_lea.vmem [#allocation2], %s361
        %p363 = pneg %p167
        %p364 = pneg %p164
        %s365 = sand.u32 %s182, 1
        %s366 = scalar_lea.sflag [#allocation6], %s365
        %s367 = sand.u32 %s182, 1
        %s368 = smul.addr %s367, 512
        %s369 = scalar_lea.vmem [#allocation5], %s368
        %p370 = pneg %p195
        %p371 = pneg %p192
        %p372 = pneg %p223
        %p373 = pneg %p220
        %s374 = sand.u32 %s210, 1
        %s375 = scalar_lea.sflag [#allocation4], %s374
        %s376 = sand.u32 %s210, 1
        %s377 = smul.addr %s376, 512
        %s378 = scalar_lea.vmem [#allocation7], %s377
        %s379 = smul.u32 2, %s31
        %s380 = ssub.s32 3, %s379
        %p381 = scmp.lt.s32.totalorder %s380, 2
        %s382 = scalar_select %p381, %s380, 2
        %s383 = smul.u32 32, %s382
        %s384 = smul.u32 2, %s31
        %s385 = ssub.s32 3, %s384
        %p386 = scmp.lt.s32.totalorder %s385, 2
        %s387 = scalar_select %p386, %s385, 2
        %s388 = smul.u32 256, %s387
        %s389 = smul.u32 2, %s31
        %s390 = ssub.s32 3, %s389
        %p391 = scmp.lt.s32.totalorder %s390, 2
        %s392 = scalar_select %p391, %s390, 2
        %s393 = smul.u32 256, %s392
        %v395 = vld [vmem:[%s332] sm:$0xff]
        %v396 = vld [vmem:[%s332 + $0x8] sm:$0xff]
        %v397 = vld [vmem:[%s332 + $0x10] sm:$0xff]
        %v398 = vld [vmem:[%s332 + $0x18] sm:$0xff]
        %v399 = vld [vmem:[%s332 + $0x20] sm:$0xff]
        %v400 = vld [vmem:[%s332 + $0x28] sm:$0xff]
        %v401 = vld [vmem:[%s332 + $0x30] sm:$0xff]
        %v402 = vld [vmem:[%s332 + $0x38] sm:$0xff]
        %v403 = vld [vmem:[%s0] sm:$0xf]
        %v404 = vld [vmem:[%s0 + $0x4] sm:$0xf]
        %v405 = vld [vmem:[%s0 + $0x8] sm:$0xf]
        %v406 = vld [vmem:[%s0 + $0xc] sm:$0xf]
        %v411 = vunpack.c.l.b16 %v403
        %v412 = vunpack.c.l.b16 %v404
        %v413 = vunpack.c.l.b16 %v405
        %v414 = vunpack.c.l.b16 %v406
        %v415 = vpack.c.b16 %v412, %v411
        %v416 = vpack.c.b16 %v414, %v413
        %v425 = vunpack.c.l.b16 %v395
        %v426 = vunpack.c.h.b16 %v395
        %v427 = vunpack.c.l.b16 %v396
        %v428 = vunpack.c.h.b16 %v396
        %v429 = vunpack.c.l.b16 %v397
        %v430 = vunpack.c.h.b16 %v397
        %v431 = vunpack.c.l.b16 %v398
        %v432 = vunpack.c.h.b16 %v398
        %v433 = vunpack.c.l.b16 %v399
        %v434 = vunpack.c.h.b16 %v399
        %v435 = vunpack.c.l.b16 %v400
        %v436 = vunpack.c.h.b16 %v400
        %v437 = vunpack.c.l.b16 %v401
        %v438 = vunpack.c.h.b16 %v401
        %v439 = vunpack.c.l.b16 %v402
        %v440 = vunpack.c.h.b16 %v402
        %v441 = vpack.c.b16 %v427, %v425
        %v442 = vpack.c.b16 %v428, %v426
        %v443 = vpack.c.b16 %v431, %v429
        %v444 = vpack.c.b16 %v432, %v430
        %v445 = vpack.c.b16 %v435, %v433
        %v446 = vpack.c.b16 %v436, %v434
        %v447 = vpack.c.b16 %v439, %v437
        %v448 = vpack.c.b16 %v440, %v438
        %vm457 = vcmask 523264
        %v459 = vsel %vm457, %v415, 0
        %v462 = vsel %vm457, %v416, 0
        %464 = vmatpush.bf16.msra.mxu0 0
        %465 = vmatpush.bf16.msra.mxu0 0
        %466 = vmatpush.bf16.msra.mxu0 0
        %467 = vmatpush.bf16.msra.mxu0 0
        %468 = vmatpush.bf16.msra.mxu0 %v447
        %469 = vmatpush.bf16.msra.mxu0 %v445
        %470 = vmatpush.bf16.msra.mxu0 %v443
        %471 = vmatpush.bf16.msra.mxu0 %v441
        %472 = vmatmul.bf16.gmra.mxu0 %v459
        %v473 = vpop.f32.mrf.mxu0
        %v474 = vadd.f32 0.0, %v473
        %v475 = vpop.f32.mrf.mxu0
        %v476 = vadd.f32 0.0, %v475
        %477 = vmatmul.bf16.gmra.mxu0 %v462
        %v478 = vpop.f32.mrf.mxu0
        %v479 = vadd.f32 0.0, %v478
        %v480 = vpop.f32.mrf.mxu0
        %v481 = vadd.f32 0.0, %v480
        %482 = vdwg.mxu0
        %483 = vmatpush.bf16.msra.mxu0 0
        %484 = vmatpush.bf16.msra.mxu0 0
        %485 = vmatpush.bf16.msra.mxu0 0
        %486 = vmatpush.bf16.msra.mxu0 0
        %487 = vmatpush.bf16.msra.mxu0 %v448
        %488 = vmatpush.bf16.msra.mxu0 %v446
        %489 = vmatpush.bf16.msra.mxu0 %v444
        %490 = vmatpush.bf16.msra.mxu0 %v442
        %491 = vmatmul.bf16.gmra.mxu0 %v459
        %v492 = vpop.f32.mrf.mxu0
        %v493 = vadd.f32 0.0, %v492
        %v494 = vpop.f32.mrf.mxu0
        %v495 = vadd.f32 0.0, %v494
        %496 = vmatmul.bf16.gmra.mxu0 %v462
        %v497 = vpop.f32.mrf.mxu0
        %v498 = vadd.f32 0.0, %v497
        %v499 = vpop.f32.mrf.mxu0
        %v500 = vadd.f32 0.0, %v499
        %501 = vdwg.mxu0
        %v502 = vld [vmem:[%s1] sm:$0xff]
        %v503 = vld [vmem:[%s1 + $0x8] sm:$0xff]
        %v504 = vld [vmem:[%s1 + $0x10] sm:$0xff]
        %v505 = vld [vmem:[%s1 + $0x18] sm:$0xff]
        %507 = vset.pattern.permute.xlu0 0
        %508 = vperm.xlu0 %507, %v502
        %v509 = vpop.permute.xlu0 %508
        %512 = vset.pattern.permute.xlu0 0
        %513 = vperm.xlu0 %512, %v503
        %v514 = vpop.permute.xlu0 %513
        %517 = vset.pattern.permute.xlu0 0
        %518 = vperm.xlu0 %517, %v504
        %v519 = vpop.permute.xlu0 %518
        %522 = vset.pattern.permute.xlu0 0
        %523 = vperm.xlu0 %522, %v505
        %v524 = vpop.permute.xlu0 %523
        %v526 = vmul.f32 %v474, %v509
        %v527 = vmul.f32 %v493, %v509
        %v528 = vmul.f32 %v476, %v514
        %v529 = vmul.f32 %v495, %v514
        %v530 = vmul.f32 %v479, %v519
        %v531 = vmul.f32 %v498, %v519
        %v532 = vmul.f32 %v481, %v524
        %v533 = vmul.f32 %v500, %v524
        %v534 = vld [vmem:[%s2] sm:$0xff]
        %v535 = vld [vmem:[%s2 + $0x8] sm:$0xff]
        %v536 = vld [vmem:[%s2 + $0x10] sm:$0xff]
        %v537 = vld [vmem:[%s2 + $0x18] sm:$0xff]
        %539 = vset.pattern.permute.xlu0 0
        %540 = vperm.xlu0 %539, %v534
        %v541 = vpop.permute.xlu0 %540
        %544 = vset.pattern.permute.xlu0 0
        %545 = vperm.xlu0 %544, %v535
        %v546 = vpop.permute.xlu0 %545
        %549 = vset.pattern.permute.xlu0 0
        %550 = vperm.xlu0 %549, %v536
        %v551 = vpop.permute.xlu0 %550
        %554 = vset.pattern.permute.xlu0 0
        %555 = vperm.xlu0 %554, %v537
        %v556 = vpop.permute.xlu0 %555
        %v558 = vadd.f32 %v526, %v541
        %v559 = vadd.f32 %v527, %v541
        %v560 = vadd.f32 %v528, %v546
        %v561 = vadd.f32 %v529, %v546
        %v562 = vadd.f32 %v530, %v551
        %v563 = vadd.f32 %v531, %v551
        %v564 = vadd.f32 %v532, %v556
        %v565 = vadd.f32 %v533, %v556
        %vm566 = vcmp.ge.f32.partialorder %v558, 0.0
        %vm567 = vcmp.ge.f32.partialorder %v559, 0.0
        %vm568 = vcmp.ge.f32.partialorder %v560, 0.0
        %vm569 = vcmp.ge.f32.partialorder %v561, 0.0
        %vm570 = vcmp.ge.f32.partialorder %v562, 0.0
        %vm571 = vcmp.ge.f32.partialorder %v563, 0.0
        %vm572 = vcmp.ge.f32.partialorder %v564, 0.0
        %vm573 = vcmp.ge.f32.partialorder %v565, 0.0
        %v574 = vmul.f32 %v558, 0.01
        %v575 = vmul.f32 %v559, 0.01
        %v576 = vmul.f32 %v560, 0.01
        %v577 = vmul.f32 %v561, 0.01
        %v578 = vmul.f32 %v562, 0.01
        %v579 = vmul.f32 %v563, 0.01
        %v580 = vmul.f32 %v564, 0.01
        %v581 = vmul.f32 %v565, 0.01
        %v582 = vsel %vm566, %v558, %v574
        %v583 = vsel %vm567, %v559, %v575
        %v584 = vsel %vm568, %v560, %v576
        %v585 = vsel %vm569, %v561, %v577
        %v586 = vsel %vm570, %v562, %v578
        %v587 = vsel %vm571, %v563, %v579
        %v588 = vsel %vm572, %v564, %v580
        %v589 = vsel %vm573, %v565, %v581
        %v590 = vld [vmem:[%s3] sm:$0xf]
        %v591 = vld [vmem:[%s3 + $0x4] sm:$0xf]
        %v592 = vld [vmem:[%s3 + $0x8] sm:$0xf]
        %v593 = vld [vmem:[%s3 + $0xc] sm:$0xf]
        %v594 = vpack.c.bf16 %v584, %v582
        %v595 = vpack.c.bf16 %v585, %v583
        %v596 = vpack.c.bf16 %v588, %v586
        %v597 = vpack.c.bf16 %v589, %v587
        %v598 = vld [vmem:[%s4] sm:$0xff]
        %v599 = vld [vmem:[%s4 + $0x8] sm:$0xff]
        %v600 = vld [vmem:[%s4 + $0x10] sm:$0xff]
        %v601 = vld [vmem:[%s4 + $0x18] sm:$0xff]
        %603 = vset.pattern.permute.xlu0 0
        %604 = vperm.xlu0 %603, %v598
        %v605 = vpop.permute.xlu0 %604
        %608 = vset.pattern.permute.xlu0 0
        %609 = vperm.xlu0 %608, %v599
        %v610 = vpop.permute.xlu0 %609
        %613 = vset.pattern.permute.xlu0 0
        %614 = vperm.xlu0 %613, %v600
        %v615 = vpop.permute.xlu0 %614
        %618 = vset.pattern.permute.xlu0 0
        %619 = vperm.xlu0 %618, %v601
        %v620 = vpop.permute.xlu0 %619
        %v626 = vunpack.c.l.b16 %v590
        %v627 = vunpack.c.l.b16 %v591
        %v628 = vunpack.c.l.b16 %v592
        %v629 = vunpack.c.l.b16 %v593
        %v630 = vpack.c.b16 %v627, %v626
        %v631 = vpack.c.b16 %v629, %v628
        %vm632 = vcmask 261120
        %v634 = vsel %vm632, %v630, 0
        %v637 = vsel %vm632, %v631, 0
        %639 = vmatpush.bf16.msra.mxu0 0
        %640 = vmatpush.bf16.msra.mxu0 0
        %641 = vmatpush.bf16.msra.mxu0 0
        %642 = vmatpush.bf16.msra.mxu0 0
        %643 = vmatpush.bf16.msra.mxu0 0
        %644 = vmatpush.bf16.msra.mxu0 0
        %645 = vmatpush.bf16.msra.mxu0 %v596
        %646 = vmatpush.bf16.msra.mxu0 %v594
        %647 = vmatmul.bf16.gmra.mxu0 %v634
        %v648 = vpop.f32.mrf.mxu0
        %v649 = vadd.f32 %v605, %v648
        %v650 = vpop.f32.mrf.mxu0
        %v651 = vadd.f32 %v610, %v650
        %652 = vmatmul.bf16.gmra.mxu0 %v637
        %v653 = vpop.f32.mrf.mxu0
        %v654 = vadd.f32 %v615, %v653
        %v655 = vpop.f32.mrf.mxu0
        %v656 = vadd.f32 %v620, %v655
        %657 = vdwg.mxu0
        %658 = vmatpush.bf16.msra.mxu0 0
        %659 = vmatpush.bf16.msra.mxu0 0
        %660 = vmatpush.bf16.msra.mxu0 0
        %661 = vmatpush.bf16.msra.mxu0 0
        %662 = vmatpush.bf16.msra.mxu0 0
        %663 = vmatpush.bf16.msra.mxu0 0
        %664 = vmatpush.bf16.msra.mxu0 %v597
        %665 = vmatpush.bf16.msra.mxu0 %v595
        %666 = vmatmul.bf16.gmra.mxu0 %v634
        %v667 = vpop.f32.mrf.mxu0
        %v668 = vadd.f32 %v605, %v667
        %v669 = vpop.f32.mrf.mxu0
        %v670 = vadd.f32 %v610, %v669
        %671 = vmatmul.bf16.gmra.mxu0 %v637
        %v672 = vpop.f32.mrf.mxu0
        %v673 = vadd.f32 %v615, %v672
        %v674 = vpop.f32.mrf.mxu0
        %v675 = vadd.f32 %v620, %v674
        %676 = vdwg.mxu0
        %v677 = vsub.f32 0.0, %v649
        %v678 = vsub.f32 0.0, %v668
        %v679 = vsub.f32 0.0, %v651
        %v680 = vsub.f32 0.0, %v670
        %v681 = vsub.f32 0.0, %v654
        %v682 = vsub.f32 0.0, %v673
        %v683 = vsub.f32 0.0, %v656
        %v684 = vsub.f32 0.0, %v675
        %v685 = vmul.f32 %v677, 1.442695
        %v686 = vpow.pop %v685
        %v687 = vmul.f32 %v678, 1.442695
        %v688 = vpow.pop %v687
        %v689 = vmul.f32 %v679, 1.442695
        %v690 = vpow.pop %v689
        %v691 = vmul.f32 %v680, 1.442695
        %v692 = vpow.pop %v691
        %v693 = vmul.f32 %v681, 1.442695
        %v694 = vpow.pop %v693
        %v695 = vmul.f32 %v682, 1.442695
        %v696 = vpow.pop %v695
        %v697 = vmul.f32 %v683, 1.442695
        %v698 = vpow.pop %v697
        %v699 = vmul.f32 %v684, 1.442695
        %v700 = vpow.pop %v699
        %v701 = vadd.f32 %v686, 1.0
        %v702 = vadd.f32 %v688, 1.0
        %v703 = vadd.f32 %v690, 1.0
        %v704 = vadd.f32 %v692, 1.0
        %v705 = vadd.f32 %v694, 1.0
        %v706 = vadd.f32 %v696, 1.0
        %v707 = vadd.f32 %v698, 1.0
        %v708 = vadd.f32 %v700, 1.0
        %v709 = vrcp.pop %v701
        %v710 = vrcp.pop %v702
        %v711 = vrcp.pop %v703
        %v712 = vrcp.pop %v704
        %v713 = vrcp.pop %v705
        %v714 = vrcp.pop %v706
        %v715 = vrcp.pop %v707
        %v716 = vrcp.pop %v708
        %v725 = vrot.slane %v710, 7
        %v726 = vrot.slane %v712, 7
        %v727 = vrot.slane %v714, 7
        %v728 = vrot.slane %v716, 7
        %vm729 = vcmask 1040384
        %v730 = vsel %vm729, %v709, %v725
        %vm731 = vcmask 1041409
        %v732 = vsel %vm731, %v709, %v725
        %v733 = vrot.slane %v732, 1
        %vm734 = vcmask 1042434
        %v735 = vsel %vm734, %v709, %v725
        %v736 = vrot.slane %v735, 2
        %vm737 = vcmask 1043459
        %v738 = vsel %vm737, %v709, %v725
        %v739 = vrot.slane %v738, 3
        %vm740 = vcmask 1044484
        %v741 = vsel %vm740, %v709, %v725
        %v742 = vrot.slane %v741, 4
        %vm743 = vcmask 1045509
        %v744 = vsel %vm743, %v709, %v725
        %v745 = vrot.slane %v744, 5
        %vm746 = vcmask 1046534
        %v747 = vsel %vm746, %v709, %v725
        %v748 = vrot.slane %v747, 6
        %vm749 = vcmask 1046528
        %v750 = vsel %vm749, %v725, %v709
        %v751 = vrot.slane %v750, 7
        %v752 = vsel %vm729, %v711, %v726
        %v753 = vsel %vm731, %v711, %v726
        %v754 = vrot.slane %v753, 1
        %v755 = vsel %vm734, %v711, %v726
        %v756 = vrot.slane %v755, 2
        %v757 = vsel %vm737, %v711, %v726
        %v758 = vrot.slane %v757, 3
        %v759 = vsel %vm740, %v711, %v726
        %v760 = vrot.slane %v759, 4
        %v761 = vsel %vm743, %v711, %v726
        %v762 = vrot.slane %v761, 5
        %v763 = vsel %vm746, %v711, %v726
        %v764 = vrot.slane %v763, 6
        %v765 = vsel %vm749, %v726, %v711
        %v766 = vrot.slane %v765, 7
        %v767 = vsel %vm729, %v713, %v727
        %v768 = vsel %vm731, %v713, %v727
        %v769 = vrot.slane %v768, 1
        %v770 = vsel %vm734, %v713, %v727
        %v771 = vrot.slane %v770, 2
        %v772 = vsel %vm737, %v713, %v727
        %v773 = vrot.slane %v772, 3
        %v774 = vsel %vm740, %v713, %v727
        %v775 = vrot.slane %v774, 4
        %v776 = vsel %vm743, %v713, %v727
        %v777 = vrot.slane %v776, 5
        %v778 = vsel %vm746, %v713, %v727
        %v779 = vrot.slane %v778, 6
        %v780 = vsel %vm749, %v727, %v713
        %v781 = vrot.slane %v780, 7
        %v782 = vsel %vm729, %v715, %v728
        %v783 = vsel %vm731, %v715, %v728
        %v784 = vrot.slane %v783, 1
        %v785 = vsel %vm734, %v715, %v728
        %v786 = vrot.slane %v785, 2
        %v787 = vsel %vm737, %v715, %v728
        %v788 = vrot.slane %v787, 3
        %v789 = vsel %vm740, %v715, %v728
        %v790 = vrot.slane %v789, 4
        %v791 = vsel %vm743, %v715, %v728
        %v792 = vrot.slane %v791, 5
        %v793 = vsel %vm746, %v715, %v728
        %v794 = vrot.slane %v793, 6
        %v795 = vsel %vm749, %v728, %v715
        %v796 = vrot.slane %v795, 7
        %v797 = vld [vmem:[%s342] sm:$0xff]
        %v798 = vld [vmem:[%s342 + $0x8] sm:$0xff]
        %v799 = vld [vmem:[%s342 + $0x10] sm:$0xff]
        %v800 = vld [vmem:[%s342 + $0x18] sm:$0xff]
        %v801 = vld [vmem:[%s342 + $0x20] sm:$0xff]
        %v802 = vld [vmem:[%s342 + $0x28] sm:$0xff]
        %v803 = vld [vmem:[%s342 + $0x30] sm:$0xff]
        %v804 = vld [vmem:[%s342 + $0x38] sm:$0xff]
        %v805 = vld [vmem:[%s342 + $0x40] sm:$0xff]
        %v806 = vld [vmem:[%s342 + $0x48] sm:$0xff]
        %v807 = vld [vmem:[%s342 + $0x50] sm:$0xff]
        %v808 = vld [vmem:[%s342 + $0x58] sm:$0xff]
        %v809 = vld [vmem:[%s342 + $0x60] sm:$0xff]
        %v810 = vld [vmem:[%s342 + $0x68] sm:$0xff]
        %v811 = vld [vmem:[%s342 + $0x70] sm:$0xff]
        %v812 = vld [vmem:[%s342 + $0x78] sm:$0xff]
        %v813 = vld [vmem:[%s342 + $0x80] sm:$0xff]
        %v814 = vld [vmem:[%s342 + $0x88] sm:$0xff]
        %v815 = vld [vmem:[%s342 + $0x90] sm:$0xff]
        %v816 = vld [vmem:[%s342 + $0x98] sm:$0xff]
        %v817 = vld [vmem:[%s342 + $0xa0] sm:$0xff]
        %v818 = vld [vmem:[%s342 + $0xa8] sm:$0xff]
        %v819 = vld [vmem:[%s342 + $0xb0] sm:$0xff]
        %v820 = vld [vmem:[%s342 + $0xb8] sm:$0xff]
        %v821 = vld [vmem:[%s342 + $0xc0] sm:$0xff]
        %v822 = vld [vmem:[%s342 + $0xc8] sm:$0xff]
        %v823 = vld [vmem:[%s342 + $0xd0] sm:$0xff]
        %v824 = vld [vmem:[%s342 + $0xd8] sm:$0xff]
        %v825 = vld [vmem:[%s342 + $0xe0] sm:$0xff]
        %v826 = vld [vmem:[%s342 + $0xe8] sm:$0xff]
        %v827 = vld [vmem:[%s342 + $0xf0] sm:$0xff]
        %v828 = vld [vmem:[%s342 + $0xf8] sm:$0xff]
        %v829 = vld [vmem:[%s342 + $0x100] sm:$0xff]
        %v830 = vld [vmem:[%s342 + $0x108] sm:$0xff]
        %v831 = vld [vmem:[%s342 + $0x110] sm:$0xff]
        %v832 = vld [vmem:[%s342 + $0x118] sm:$0xff]
        %v833 = vld [vmem:[%s342 + $0x120] sm:$0xff]
        %v834 = vld [vmem:[%s342 + $0x128] sm:$0xff]
        %v835 = vld [vmem:[%s342 + $0x130] sm:$0xff]
        %v836 = vld [vmem:[%s342 + $0x138] sm:$0xff]
        %v837 = vld [vmem:[%s342 + $0x140] sm:$0xff]
        %v838 = vld [vmem:[%s342 + $0x148] sm:$0xff]
        %v839 = vld [vmem:[%s342 + $0x150] sm:$0xff]
        %v840 = vld [vmem:[%s342 + $0x158] sm:$0xff]
        %v841 = vld [vmem:[%s342 + $0x160] sm:$0xff]
        %v842 = vld [vmem:[%s342 + $0x168] sm:$0xff]
        %v843 = vld [vmem:[%s342 + $0x170] sm:$0xff]
        %v844 = vld [vmem:[%s342 + $0x178] sm:$0xff]
        %v845 = vld [vmem:[%s342 + $0x180] sm:$0xff]
        %v846 = vld [vmem:[%s342 + $0x188] sm:$0xff]
        %v847 = vld [vmem:[%s342 + $0x190] sm:$0xff]
        %v848 = vld [vmem:[%s342 + $0x198] sm:$0xff]
        %v849 = vld [vmem:[%s342 + $0x1a0] sm:$0xff]
        %v850 = vld [vmem:[%s342 + $0x1a8] sm:$0xff]
        %v851 = vld [vmem:[%s342 + $0x1b0] sm:$0xff]
        %v852 = vld [vmem:[%s342 + $0x1b8] sm:$0xff]
        %v853 = vld [vmem:[%s342 + $0x1c0] sm:$0xff]
        %v854 = vld [vmem:[%s342 + $0x1c8] sm:$0xff]
        %v855 = vld [vmem:[%s342 + $0x1d0] sm:$0xff]
        %v856 = vld [vmem:[%s342 + $0x1d8] sm:$0xff]
        %v857 = vld [vmem:[%s342 + $0x1e0] sm:$0xff]
        %v858 = vld [vmem:[%s342 + $0x1e8] sm:$0xff]
        %v859 = vld [vmem:[%s342 + $0x1f0] sm:$0xff]
        %v860 = vld [vmem:[%s342 + $0x1f8] sm:$0xff]
        %v861 = vperm.slane %v730, 0
        %v862 = vperm.slane %v730, 1
        %v863 = vperm.slane %v733, 0
        %v864 = vperm.slane %v733, 1
        %v865 = vperm.slane %v736, 0
        %v866 = vperm.slane %v736, 1
        %v867 = vperm.slane %v739, 0
        %v868 = vperm.slane %v739, 1
        %v869 = vperm.slane %v742, 0
        %v870 = vperm.slane %v742, 1
        %v871 = vperm.slane %v745, 0
        %v872 = vperm.slane %v745, 1
        %v873 = vperm.slane %v748, 0
        %v874 = vperm.slane %v748, 1
        %v875 = vperm.slane %v751, 0
        %v876 = vperm.slane %v751, 1
        %v877 = vperm.slane %v752, 0
        %v878 = vperm.slane %v752, 1
        %v879 = vperm.slane %v754, 0
        %v880 = vperm.slane %v754, 1
        %v881 = vperm.slane %v756, 0
        %v882 = vperm.slane %v756, 1
        %v883 = vperm.slane %v758, 0
        %v884 = vperm.slane %v758, 1
        %v885 = vperm.slane %v760, 0
        %v886 = vperm.slane %v760, 1
        %v887 = vperm.slane %v762, 0
        %v888 = vperm.slane %v762, 1
        %v889 = vperm.slane %v764, 0
        %v890 = vperm.slane %v764, 1
        %v891 = vperm.slane %v766, 0
        %v892 = vperm.slane %v766, 1
        %v893 = vperm.slane %v767, 0
        %v894 = vperm.slane %v767, 1
        %v895 = vperm.slane %v769, 0
        %v896 = vperm.slane %v769, 1
        %v897 = vperm.slane %v771, 0
        %v898 = vperm.slane %v771, 1
        %v899 = vperm.slane %v773, 0
        %v900 = vperm.slane %v773, 1
        %v901 = vperm.slane %v775, 0
        %v902 = vperm.slane %v775, 1
        %v903 = vperm.slane %v777, 0
        %v904 = vperm.slane %v777, 1
        %v905 = vperm.slane %v779, 0
        %v906 = vperm.slane %v779, 1
        %v907 = vperm.slane %v781, 0
        %v908 = vperm.slane %v781, 1
        %v909 = vperm.slane %v782, 0
        %v910 = vperm.slane %v782, 1
        %v911 = vperm.slane %v784, 0
        %v912 = vperm.slane %v784, 1
        %v913 = vperm.slane %v786, 0
        %v914 = vperm.slane %v786, 1
        %v915 = vperm.slane %v788, 0
        %v916 = vperm.slane %v788, 1
        %v917 = vperm.slane %v790, 0
        %v918 = vperm.slane %v790, 1
        %v919 = vperm.slane %v792, 0
        %v920 = vperm.slane %v792, 1
        %v921 = vperm.slane %v794, 0
        %v922 = vperm.slane %v794, 1
        %v923 = vperm.slane %v796, 0
        %v924 = vperm.slane %v796, 1
        %v989 = vmul.f32 %v861, %v797
        %v990 = vmul.f32 %v862, %v798
        %v991 = vmul.f32 %v863, %v799
        %v992 = vmul.f32 %v864, %v800
        %v993 = vmul.f32 %v865, %v801
        %v994 = vmul.f32 %v866, %v802
        %v995 = vmul.f32 %v867, %v803
        %v996 = vmul.f32 %v868, %v804
        %v997 = vmul.f32 %v869, %v805
        %v998 = vmul.f32 %v870, %v806
        %v999 = vmul.f32 %v871, %v807
        %v1000 = vmul.f32 %v872, %v808
        %v1001 = vmul.f32 %v873, %v809
        %v1002 = vmul.f32 %v874, %v810
        %v1003 = vmul.f32 %v875, %v811
        %v1004 = vmul.f32 %v876, %v812
        %v1005 = vmul.f32 %v877, %v813
        %v1006 = vmul.f32 %v878, %v814
        %v1007 = vmul.f32 %v879, %v815
        %v1008 = vmul.f32 %v880, %v816
        %v1009 = vmul.f32 %v881, %v817
        %v1010 = vmul.f32 %v882, %v818
        %v1011 = vmul.f32 %v883, %v819
        %v1012 = vmul.f32 %v884, %v820
        %v1013 = vmul.f32 %v885, %v821
        %v1014 = vmul.f32 %v886, %v822
        %v1015 = vmul.f32 %v887, %v823
        %v1016 = vmul.f32 %v888, %v824
        %v1017 = vmul.f32 %v889, %v825
        %v1018 = vmul.f32 %v890, %v826
        %v1019 = vmul.f32 %v891, %v827
        %v1020 = vmul.f32 %v892, %v828
        %v1021 = vmul.f32 %v893, %v829
        %v1022 = vmul.f32 %v894, %v830
        %v1023 = vmul.f32 %v895, %v831
        %v1024 = vmul.f32 %v896, %v832
        %v1025 = vmul.f32 %v897, %v833
        %v1026 = vmul.f32 %v898, %v834
        %v1027 = vmul.f32 %v899, %v835
        %v1028 = vmul.f32 %v900, %v836
        %v1029 = vmul.f32 %v901, %v837
        %v1030 = vmul.f32 %v902, %v838
        %v1031 = vmul.f32 %v903, %v839
        %v1032 = vmul.f32 %v904, %v840
        %v1033 = vmul.f32 %v905, %v841
        %v1034 = vmul.f32 %v906, %v842
        %v1035 = vmul.f32 %v907, %v843
        %v1036 = vmul.f32 %v908, %v844
        %v1037 = vmul.f32 %v909, %v845
        %v1038 = vmul.f32 %v910, %v846
        %v1039 = vmul.f32 %v911, %v847
        %v1040 = vmul.f32 %v912, %v848
        %v1041 = vmul.f32 %v913, %v849
        %v1042 = vmul.f32 %v914, %v850
        %v1043 = vmul.f32 %v915, %v851
        %v1044 = vmul.f32 %v916, %v852
        %v1045 = vmul.f32 %v917, %v853
        %v1046 = vmul.f32 %v918, %v854
        %v1047 = vmul.f32 %v919, %v855
        %v1048 = vmul.f32 %v920, %v856
        %v1049 = vmul.f32 %v921, %v857
        %v1050 = vmul.f32 %v922, %v858
        %v1051 = vmul.f32 %v923, %v859
        %v1052 = vmul.f32 %v924, %v860
        %1053 = vst [vmem:[%s378] sm:$0xff] %v989
        %1054 = vst [vmem:[%s378 + $0x8] sm:$0xff] %v990
        %1055 = vst [vmem:[%s378 + $0x10] sm:$0xff] %v991
        %1056 = vst [vmem:[%s378 + $0x18] sm:$0xff] %v992
        %1057 = vst [vmem:[%s378 + $0x20] sm:$0xff] %v993
        %1058 = vst [vmem:[%s378 + $0x28] sm:$0xff] %v994
        %1059 = vst [vmem:[%s378 + $0x30] sm:$0xff] %v995
        %1060 = vst [vmem:[%s378 + $0x38] sm:$0xff] %v996
        %1061 = vst [vmem:[%s378 + $0x40] sm:$0xff] %v997
        %1062 = vst [vmem:[%s378 + $0x48] sm:$0xff] %v998
        %1063 = vst [vmem:[%s378 + $0x50] sm:$0xff] %v999
        %1064 = vst [vmem:[%s378 + $0x58] sm:$0xff] %v1000
        %1065 = vst [vmem:[%s378 + $0x60] sm:$0xff] %v1001
        %1066 = vst [vmem:[%s378 + $0x68] sm:$0xff] %v1002
        %1067 = vst [vmem:[%s378 + $0x70] sm:$0xff] %v1003
        %1068 = vst [vmem:[%s378 + $0x78] sm:$0xff] %v1004
        %1069 = vst [vmem:[%s378 + $0x80] sm:$0xff] %v1005
        %1070 = vst [vmem:[%s378 + $0x88] sm:$0xff] %v1006
        %1071 = vst [vmem:[%s378 + $0x90] sm:$0xff] %v1007
        %1072 = vst [vmem:[%s378 + $0x98] sm:$0xff] %v1008
        %1073 = vst [vmem:[%s378 + $0xa0] sm:$0xff] %v1009
        %1074 = vst [vmem:[%s378 + $0xa8] sm:$0xff] %v1010
        %1075 = vst [vmem:[%s378 + $0xb0] sm:$0xff] %v1011
        %1076 = vst [vmem:[%s378 + $0xb8] sm:$0xff] %v1012
        %1077 = vst [vmem:[%s378 + $0xc0] sm:$0xff] %v1013
        %1078 = vst [vmem:[%s378 + $0xc8] sm:$0xff] %v1014
        %1079 = vst [vmem:[%s378 + $0xd0] sm:$0xff] %v1015
        %1080 = vst [vmem:[%s378 + $0xd8] sm:$0xff] %v1016
        %1081 = vst [vmem:[%s378 + $0xe0] sm:$0xff] %v1017
        %1082 = vst [vmem:[%s378 + $0xe8] sm:$0xff] %v1018
        %1083 = vst [vmem:[%s378 + $0xf0] sm:$0xff] %v1019
        %1084 = vst [vmem:[%s378 + $0xf8] sm:$0xff] %v1020
        %1085 = vst [vmem:[%s378 + $0x100] sm:$0xff] %v1021
        %1086 = vst [vmem:[%s378 + $0x108] sm:$0xff] %v1022
        %1087 = vst [vmem:[%s378 + $0x110] sm:$0xff] %v1023
        %1088 = vst [vmem:[%s378 + $0x118] sm:$0xff] %v1024
        %1089 = vst [vmem:[%s378 + $0x120] sm:$0xff] %v1025
        %1090 = vst [vmem:[%s378 + $0x128] sm:$0xff] %v1026
        %1091 = vst [vmem:[%s378 + $0x130] sm:$0xff] %v1027
        %1092 = vst [vmem:[%s378 + $0x138] sm:$0xff] %v1028
        %1093 = vst [vmem:[%s378 + $0x140] sm:$0xff] %v1029
        %1094 = vst [vmem:[%s378 + $0x148] sm:$0xff] %v1030
        %1095 = vst [vmem:[%s378 + $0x150] sm:$0xff] %v1031
        %1096 = vst [vmem:[%s378 + $0x158] sm:$0xff] %v1032
        %1097 = vst [vmem:[%s378 + $0x160] sm:$0xff] %v1033
        %1098 = vst [vmem:[%s378 + $0x168] sm:$0xff] %v1034
        %1099 = vst [vmem:[%s378 + $0x170] sm:$0xff] %v1035
        %1100 = vst [vmem:[%s378 + $0x178] sm:$0xff] %v1036
        %1101 = vst [vmem:[%s378 + $0x180] sm:$0xff] %v1037
        %1102 = vst [vmem:[%s378 + $0x188] sm:$0xff] %v1038
        %1103 = vst [vmem:[%s378 + $0x190] sm:$0xff] %v1039
        %1104 = vst [vmem:[%s378 + $0x198] sm:$0xff] %v1040
        %1105 = vst [vmem:[%s378 + $0x1a0] sm:$0xff] %v1041
        %1106 = vst [vmem:[%s378 + $0x1a8] sm:$0xff] %v1042
        %1107 = vst [vmem:[%s378 + $0x1b0] sm:$0xff] %v1043
        %1108 = vst [vmem:[%s378 + $0x1b8] sm:$0xff] %v1044
        %1109 = vst [vmem:[%s378 + $0x1c0] sm:$0xff] %v1045
        %1110 = vst [vmem:[%s378 + $0x1c8] sm:$0xff] %v1046
        %1111 = vst [vmem:[%s378 + $0x1d0] sm:$0xff] %v1047
        %1112 = vst [vmem:[%s378 + $0x1d8] sm:$0xff] %v1048
        %1113 = vst [vmem:[%s378 + $0x1e0] sm:$0xff] %v1049
        %1114 = vst [vmem:[%s378 + $0x1e8] sm:$0xff] %v1050
        %1115 = vst [vmem:[%s378 + $0x1f0] sm:$0xff] %v1051
        %1116 = vst [vmem:[%s378 + $0x1f8] sm:$0xff] %v1052
        %s1117 = sand.u32 %s210, 1
        %s1118 = scalar_lea.sflag [#allocation4], %s1117
        %s1119 = sand.u32 %s210, 1
        %s1120 = smul.addr %s1119, 512
        %s1121 = scalar_lea.vmem [#allocation7], %s1120
        // Predicated region
        $region57: #{tpu_custom_call.1} parent=47 // pred_check
          %p1122 = pneg %p220
        $region58: #{tpu_custom_call.1} parent=47 // pred_check_branch
          %1124 = sbr.rel (%p1122) target = $region60
        $region59: #{tpu_custom_call.1} parent=47 // pred_region
          %s1125 = smul.u32 2, %s31
          %s1126 = ssub.s32 3, %s1125
          %p1127 = scmp.lt.s32.totalorder %s1126, 2
          %s1128 = scalar_select %p1127, %s1126, 2
          %s1129 = smul.u32 256, %s1128
          %s1130 = ssub.s32 512, %s1129
          %s1131 = sshll.u32 %s1130, 4
          %1132 = vsyncadd %s1118, %s1131
          %p1133 = scmp.ne.s32.totalorder 0, %s1129
          %s1134 = smul.addr %s32, 96
          %s1135 = sadd.s32 %s1125, %s1134
          %s1136 = smul.addr %s1135, 8
          %s1137 = scalar_lea.hbm %s7, %s1136
          %s1138 = smul.u32 %s1128, 8
          %s1139 = smul.u32 %s1138, 32
          %s1140 = sshll.u32 %s1121, 4
          %s1141 = int_to_ptr.vmem [resolvable:$true] %s1140
          %s1142 = sshll.u32 %s1137, 4
          %s1143 = int_to_ptr.hbm [resolvable:$true] %s1142
          %s1144 = sshll.u32 %s1139, 4
          %1148 = dma.vmem_to_hbm [thread:$0]  (%p1133), %s1141, %s1144, %s1143, %s1118, 256, 384, %s1138
        $region60: #{tpu_custom_call.1} parent=47 // pred_fallthru
          _
      $region48: #{tpu_custom_call.1} parent=5 // pred_fallthru
        _
      %p1149 = scmp.le.s32.totalorder 2, %s22
      // Predicated region
      $region61: #{tpu_custom_call.1} parent=5 // pred_check
        %p1150 = pneg %p1149
      $region62: #{tpu_custom_call.1} parent=5 // pred_check_branch
        %1152 = sbr.rel (%p1150) target = $region64
      $region63: #{tpu_custom_call.1} parent=5 // pred_region
        %s1153 = ssub.s32 %s22, 2
        // Predicated region
        $region65: #{tpu_custom_call.1} parent=63 // pred_check
          %p1154 = pneg %p226
        $region66: #{tpu_custom_call.1} parent=63 // pred_check_branch
          %1156 = sbr.rel (%p1154) target = $region68
        $region67: #{tpu_custom_call.1} parent=63 // pred_region
          %s1157 = sand.u32 %s211, 1
          %s1158 = scalar_lea.sflag [#allocation4], %s1157
          %s1159 = sand.u32 %s211, 1
          %s1160 = smul.addr %s1159, 512
          %s1161 = scalar_lea.vmem [#allocation7], %s1160
          %1163 = dma.done %s1158, 8192
        $region68: #{tpu_custom_call.1} parent=63 // pred_fallthru
          _
      $region64: #{tpu_custom_call.1} parent=5 // pred_fallthru
        _
    $region6: #{tpu_custom_call.1} parent=1 // loop_footer
      %s26 = sadd.s32 1, %s22
    $region7: #{tpu_custom_call.1} parent=1 // loop_footer_branch
      %21 = sbr.rel target = $region3
    $region8: #{tpu_custom_call.1} parent=1 // loop_exit
      _
    %1164 = vsyncpa [#allocation3], 1
    %s1165 = scalar_lea.sflag [#allocation3], 1
    %1166 = vsyncpa %s1165, 1
    %1167 = vsyncpa [#allocation6], 1
    %s1168 = scalar_lea.sflag [#allocation6], 1
    %1169 = vsyncpa %s1168, 1
    %1170 = vsyncpa [#allocation4], 1
    %s1171 = scalar_lea.sflag [#allocation4], 1
    %1172 = vsyncpa %s1171, 1

</llo_original>
